<compile_context>
chip_gen: v5e
topology: v5e:2x2
jax: 0.10.0
libtpu: 0.0.40
codegen_flags: <defaults>
</compile_context>

<pallas_src>
import math

import jax
import jax.numpy as jnp
from jax.experimental import pallas as pl
from jax.experimental.pallas import tpu as pltpu


# ------------------------------- kernel ------------------------------------

def attention_kernel(lens_ref, bvt_ref, s_ref, h_ref, waT_ref, ba_ref, vt_ref,
                     o_ref):
    """Whole-batch Attention.forward(s, encoder_hidden_output, lens)."""
    B, L, D = h_ref.shape

    s = s_ref[...]                                   # [B, 1, D]
    h = h_ref[...]                                   # [B, L, D]

    # score: tanh(cat([s.expand(h.shape), h], -1) @ Wa^T + ba) as a single
    # [B*L, 2D] @ [2D, D] MXU matmul (one push, K = 2D = 256).
    x = jnp.concatenate([jnp.broadcast_to(s, (B, L, D)), h], axis=-1)   # [B, L, 2D]
    proj = jnp.dot(x.reshape(B * L, 2 * D), waT_ref[...],
                   preferred_element_type=jnp.float32)                  # [B*L, D]
    t = jnp.tanh(proj + ba_ref[...]).reshape(B, L, D)                   # [B, L, D]

    # VT has out_features == 1: VPU multiply + cross-lane (XLU) reduce.
    res = jnp.sum(t * vt_ref[...], axis=-1) + bvt_ref[0]                # [B, L]

    # Multiplicative length mask BEFORE softmax, exactly like the module:
    #   attention_weight = softmax(res * mask, dim=-1)
    row_iota = jax.lax.broadcasted_iota(jnp.int32, (1, L), 1)
    mask = jnp.concatenate(
        [(row_iota < lens_ref[b]).astype(jnp.float32) for b in range(B)],
        axis=0)                                                          # [B, L]

    aw = res * mask
    m = jnp.max(aw, axis=-1, keepdims=True)                              # [B, 1]
    e = jnp.exp(aw - m)
    w = e * pl.reciprocal(jnp.sum(e, axis=-1, keepdims=True), approx=True)  # [B, L]

    # attention_sumVector = sum over L of h * w   -- done on the MXU:
    out = jnp.einsum('bql,bld->bqd', w.reshape(B, 1, L), h,
                     preferred_element_type=jnp.float32)                 # [B, 1, D]
    o_ref[...] = out.astype(o_ref.dtype)


# ------------------------------- wrapper ------------------------------------

def attention_forward(s, h, lens, wa_weight, wa_bias, vt_weight, vt_bias):
    """Pallas equivalent of Attention.forward(s, encoder_hidden_output, lens).

    s:         [B, 1, D]      (expanded to h.shape inside score())
    h:         [B, L, D]      encoder_hidden_output, L == max(lens)
    lens:      python list of ints (length B)
    wa_weight: [D, 2D]        nn.Linear(2D, D).weight
    wa_bias:   [D]
    vt_weight: [1, D]         nn.Linear(D, 1).weight
    vt_bias:   [1]
    returns:   [B, 1, D]
    """
    Bb, L, D = h.shape
    assert max(lens) == L, "module builds the mask to max(lens) == h.shape[1]"
    lens_arr = jnp.asarray(lens, dtype=jnp.int32)

    waT = wa_weight.T                                 # [2D, D] (unsplit)
    ba = wa_bias.reshape(1, D)
    vt_row = vt_weight.reshape(1, D)
    bvt = vt_bias.reshape(1).astype(jnp.float32)      # SMEM scalar

    vmem = pl.BlockSpec(memory_space=pltpu.MemorySpace.VMEM)
    smem = pl.BlockSpec(memory_space=pltpu.MemorySpace.SMEM)

    return pl.pallas_call(
        attention_kernel,
        out_shape=jax.ShapeDtypeStruct((Bb, 1, D), jnp.float32),
        in_specs=[
            smem,    # lens  int32 [B]
            smem,    # VT bias f32 [1]
            vmem,    # s     [B, 1, D]
            vmem,    # h     [B, L, D]
            vmem,    # Wa^T  [2D, D]
            vmem,    # Wa bias [1, D]
            vmem,    # VT weight row [1, D]
        ],
        out_specs=vmem,
    )(lens_arr, bvt, s, h, waT, ba, vt_row)


# ------------------------- pure-JAX reference -------------------------------

def attention_reference(s, h, lens, wa_weight, wa_bias, vt_weight, vt_bias):
    Bb, L, D = h.shape
    s_exp = jnp.broadcast_to(s, (Bb, L, D))
    x = jnp.concatenate([s_exp, h], axis=-1)                       # [B, L, 2D]
    sh = jnp.tanh(x @ wa_weight.T + wa_bias[None, None, :])        # [B, L, D]
    res = (sh @ vt_weight.T + vt_bias)[..., 0]                     # [B, L]
    mask = (jnp.arange(L)[None, :]
            < jnp.asarray(lens, jnp.int32)[:, None]).astype(jnp.float32)
    w = jax.nn.softmax(res * mask, axis=-1)                        # [B, L]
    return jnp.sum(h * w[..., None], axis=1, keepdims=True)        # [B, 1, D]


# --------------------------------- main --------------------------------------

if __name__ == "__main__":
    HIDDEN = 64
    BIDIRECTIONAL = True
    D = HIDDEN * 2 if BIDIRECTIONAL else HIDDEN      # 128 (lane-aligned)
    B, L = 2, 16
    LENS = [16, 11]                                  # max(lens) == L

    key = jax.random.PRNGKey(0)
    ks = jax.random.split(key, 6)
    s = 0.5 * jax.random.normal(ks[0], (B, 1, D), jnp.float32)
    h = 0.5 * jax.random.normal(ks[1], (B, L, D), jnp.float32)
    bound_wa = 1.0 / math.sqrt(2 * D)
    wa_weight = jax.random.uniform(ks[2], (D, 2 * D), jnp.float32, -bound_wa, bound_wa)
    wa_bias = jax.random.uniform(ks[3], (D,), jnp.float32, -bound_wa, bound_wa)
    bound_vt = 1.0 / math.sqrt(D)
    vt_weight = jax.random.uniform(ks[4], (1, D), jnp.float32, -bound_vt, bound_vt)
    vt_bias = jax.random.uniform(ks[5], (1,), jnp.float32, -bound_vt, bound_vt)

    out = attention_forward(s, h, LENS, wa_weight, wa_bias, vt_weight, vt_bias)
    out = jax.block_until_ready(out)

    ref = attention_reference(s, h, LENS, wa_weight, wa_bias, vt_weight, vt_bias)
    assert out.shape == (B, 1, D)
    assert bool(jnp.all(jnp.isfinite(out)))
    # Tolerance covers MXU default-precision f32 matmul + approx reciprocal.
    assert bool(jnp.allclose(out, ref, rtol=1e-2, atol=1e-2))
    print("KERNEL_OK")
</pallas_src>

<mosaic_0001>
module attributes {stable_mosaic.version = 11 : i64} {
  func.func @attention_kernel(%arg0: memref<2xi32, #tpu.memory_space<smem>>, %arg1: memref<1xf32, #tpu.memory_space<smem>>, %arg2: memref<2x1x128xf32, #tpu.memory_space<vmem>>, %arg3: memref<2x16x128xf32, #tpu.memory_space<vmem>>, %arg4: memref<256x128xf32, #tpu.memory_space<vmem>>, %arg5: memref<1x128xf32, #tpu.memory_space<vmem>>, %arg6: memref<1x128xf32, #tpu.memory_space<vmem>>, %arg7: memref<2x1x128xf32, #tpu.memory_space<vmem>>) attributes {dimension_semantics = [], scalar_prefetch = 0 : i64, scratch_operands = 0 : i64, tpu.core_type = #tpu.core_type<tc>} {
    %c0 = arith.constant 0 : index
    %c0_0 = arith.constant 0 : index
    %c0_1 = arith.constant 0 : index
    %0 = vector.load %arg2[%c0, %c0_0, %c0_1] : memref<2x1x128xf32, #tpu.memory_space<vmem>>, vector<2x1x128xf32>
    %c0_2 = arith.constant 0 : index
    %c0_3 = arith.constant 0 : index
    %c0_4 = arith.constant 0 : index
    %1 = vector.load %arg3[%c0_2, %c0_3, %c0_4] : memref<2x16x128xf32, #tpu.memory_space<vmem>>, vector<2x16x128xf32>
    %2 = vector.shape_cast %0 : vector<2x1x128xf32> to vector<2x1x128xf32>
    %3 = vector.broadcast %2 : vector<2x1x128xf32> to vector<2x16x128xf32>
    %4 = tpu.concatenate %3, %1 in 2 : vector<2x16x128xf32>, vector<2x16x128xf32> -> vector<2x16x256xf32>
    %5 = vector.shape_cast %4 : vector<2x16x256xf32> to vector<32x256xf32>
    %c0_5 = arith.constant 0 : index
    %c0_6 = arith.constant 0 : index
    %6 = vector.load %arg4[%c0_5, %c0_6] : memref<256x128xf32, #tpu.memory_space<vmem>>, vector<256x128xf32>
    %cst = arith.constant dense<0.000000e+00> : vector<32x128xf32>
    %7 = tpu.matmul %5, %6, %cst {dimension_numbers = #tpu.dot_dimension_numbers<[1], [0], [0], [1], [0, 0, 1, 1], [], []>} : vector<32x256xf32>, vector<256x128xf32>, vector<32x128xf32> -> vector<32x128xf32>
    %c0_7 = arith.constant 0 : index
    %c0_8 = arith.constant 0 : index
    %8 = vector.load %arg5[%c0_7, %c0_8] : memref<1x128xf32, #tpu.memory_space<vmem>>, vector<1x128xf32>
    %9 = vector.broadcast %8 : vector<1x128xf32> to vector<32x128xf32>
    %10 = arith.addf %7, %9 : vector<32x128xf32>
    %11 = math.tanh %10 : vector<32x128xf32>
    %12 = vector.shape_cast %11 : vector<32x128xf32> to vector<2x16x128xf32>
    %c0_9 = arith.constant 0 : index
    %c0_10 = arith.constant 0 : index
    %13 = vector.load %arg6[%c0_9, %c0_10] : memref<1x128xf32, #tpu.memory_space<vmem>>, vector<1x128xf32>
    %14 = vector.shape_cast %13 : vector<1x128xf32> to vector<1x1x128xf32>
    %15 = vector.broadcast %14 : vector<1x1x128xf32> to vector<2x16x128xf32>
    %16 = arith.mulf %12, %15 : vector<2x16x128xf32>
    %cst_11 = arith.constant dense<0.000000e+00> : vector<2x16xf32>
    %17 = vector.multi_reduction <add>, %16, %cst_11 [2] : vector<2x16x128xf32> to vector<2x16xf32>
    %c0_12 = arith.constant 0 : index
    %18 = memref.load %arg1[%c0_12] : memref<1xf32, #tpu.memory_space<smem>>
    %19 = vector.broadcast %18 : f32 to vector<2x16xf32>
    %20 = arith.addf %17, %19 : vector<2x16xf32>
    %21 = tpu.iota {dimensions = array<i32: 1>} : vector<1x16xi32>
    %c0_13 = arith.constant 0 : index
    %22 = memref.load %arg0[%c0_13] : memref<2xi32, #tpu.memory_space<smem>>
    %23 = vector.broadcast %22 : i32 to vector<1x16xi32>
    %24 = arith.cmpi slt, %21, %23 : vector<1x16xi32>
    %25 = arith.extui %24 : vector<1x16xi1> to vector<1x16xi32>
    %26 = arith.sitofp %25 : vector<1x16xi32> to vector<1x16xf32>
    %c1 = arith.constant 1 : index
    %27 = memref.load %arg0[%c1] : memref<2xi32, #tpu.memory_space<smem>>
    %28 = vector.broadcast %27 : i32 to vector<1x16xi32>
    %29 = arith.cmpi slt, %21, %28 : vector<1x16xi32>
    %30 = arith.extui %29 : vector<1x16xi1> to vector<1x16xi32>
    %31 = arith.sitofp %30 : vector<1x16xi32> to vector<1x16xf32>
    %32 = tpu.concatenate %26, %31 in 0 : vector<1x16xf32>, vector<1x16xf32> -> vector<2x16xf32>
    %33 = arith.mulf %20, %32 : vector<2x16xf32>
    %cst_14 = arith.constant dense<0xFF800000> : vector<2xf32>
    %34 = vector.multi_reduction <maximumf>, %33, %cst_14 [1] : vector<2x16xf32> to vector<2xf32>
    %35 = vector.shape_cast %34 : vector<2xf32> to vector<2x1xf32>
    %36 = vector.broadcast %35 : vector<2x1xf32> to vector<2x16xf32>
    %37 = arith.subf %33, %36 : vector<2x16xf32>
    %38 = math.exp %37 : vector<2x16xf32>
    %cst_15 = arith.constant dense<0.000000e+00> : vector<2xf32>
    %39 = vector.multi_reduction <add>, %38, %cst_15 [1] : vector<2x16xf32> to vector<2xf32>
    %40 = vector.shape_cast %39 : vector<2xf32> to vector<2x1xf32>
    %41 = tpu.reciprocal %40 {approx = true} : vector<2x1xf32> -> vector<2x1xf32>
    %42 = vector.broadcast %41 : vector<2x1xf32> to vector<2x16xf32>
    %43 = arith.mulf %38, %42 : vector<2x16xf32>
    %44 = vector.shape_cast %43 : vector<2x16xf32> to vector<2x1x16xf32>
    "tpu.trace_start"() <{level = 10 : i32, message = "bql,bld->bqd"}> : () -> ()
    %cst_16 = arith.constant dense<0.000000e+00> : vector<2x1x128xf32>
    %45 = tpu.matmul %44, %1, %cst_16 {dimension_numbers = #tpu.dot_dimension_numbers<[2], [1], [1], [2], [0, 0, 0, 1, 1, 2], [0], [0]>} : vector<2x1x16xf32>, vector<2x16x128xf32>, vector<2x1x128xf32> -> vector<2x1x128xf32>
    "tpu.trace_stop"() : () -> ()
    %c0_17 = arith.constant 0 : index
    %c0_18 = arith.constant 0 : index
    %c0_19 = arith.constant 0 : index
    %46 = vector.load %arg7[%c0_17, %c0_18, %c0_19] : memref<2x1x128xf32, #tpu.memory_space<vmem>>, vector<2x1x128xf32>
    tpu.vector_store %arg7[%c0_17, %c0_18, %c0_19], %45 {strides = array<i32>} : memref<2x1x128xf32, #tpu.memory_space<vmem>>, vector<2x1x128xf32>,
    return
  }
}

</mosaic_0001>

<llo_original>
// kernel: tpu_custom_call.1
$region0: #{tpu_custom_call.1}
  #allocation0 [shape = 'u32[]', space=smem, size = 0x4, offset = 0x4, fixed_abs, tag = 'smem constant byte address 0x4 - core index']
  #allocation1 [shape = 'u32[72,128]{1,0:T(1,128)}', space=vmem, size = 0x9000, scoped, tag = 'internal scratch']
  #allocation2 [shape = 'f32[1]{0:T(128)S(6)}', space=smem, size = 0x200, scoped, tag = 'scoped memory for tpu_custom_call.1']
  %s0 = inlined_call_operand.hbm [shape: s32[2], index: 0, kind: input, shape index: {}]
  %s1 = inlined_call_operand.<no memory space> [shape: f32[1], index: 1, kind: input, shape index: {}]
  %s2 = inlined_call_operand.vmem [shape: f32[2,1,128], index: 2, kind: input, shape index: {}]
  %s3 = inlined_call_operand.hbm [shape: f32[2,16,128], index: 3, kind: input, shape index: {}]
  %s4 = inlined_call_operand.hbm [shape: f32[256,128], index: 4, kind: input, shape index: {}]
  %s5 = inlined_call_operand.vmem [shape: f32[1,128], index: 5, kind: input, shape index: {}]
  %s6 = inlined_call_operand.vmem [shape: f32[1,128], index: 6, kind: input, shape index: {}]
  %s7 = inlined_call_operand.hbm [shape: f32[2,1,128], index: 7, kind: output, shape index: {}]
  %s8 = sld [smem:[#allocation0]]
  $region50: #{tpu_custom_call.1} parent=0
    _
  %s10 = ssub.s32 1, %s8
  %s11 = scalar_select 0, %s10, %s8
  %12 = sst [smem:[#allocation2]] %s1
  $region1: #{tpu_custom_call.1} parent=0
    #allocation3 [shape = 'u8[512]{0}', space=smem, size = 0x200, scoped, tag = 'input window, operand 0, single buffered']
    #allocation4 [shape = 's32[1]{0}', space=sflag, size = 0x4, scoped, tag = 'scoped memory for tpu_custom_call.1']
    #allocation5 [shape = 's32[1]{0}', space=sflag, size = 0x4, scoped, tag = 'scoped memory for tpu_custom_call.1']
    #allocation6 [shape = 's32[1]{0}', space=sflag, size = 0x4, scoped, tag = 'scoped memory for tpu_custom_call.1']
    #allocation7 [shape = 'u8[16384]{0}', space=vmem, size = 0x4000, scoped, tag = 'input window, operand 3, single buffered']
    #allocation8 [shape = 'u8[131072]{0}', space=vmem, size = 0x20000, scoped, tag = 'input window, operand 4, single buffered']
    #allocation9 [shape = 's32[1]{0}', space=sflag, size = 0x4, scoped, tag = 'scoped memory for tpu_custom_call.1']
    #allocation10 [shape = 'u8[1024]{0}', space=vmem, size = 0x400, scoped, tag = 'output window, operand 0, single buffered']
    %13 = vsyncpa [#allocation6], 0
    %14 = vsyncpa [#allocation4], 0
    %15 = vsyncpa [#allocation9], 0
    %16 = vsyncpa [#allocation5], 0
    // Predicated region
    $region2: #{tpu_custom_call.1} parent=1 // pred_check
      _
    $region3: #{tpu_custom_call.1} parent=1 // pred_check_branch
      %18 = sbr.rel (0) target = $region5
    $region4: #{tpu_custom_call.1} parent=1 // pred_region
      %20 = vsyncadd [#allocation6], 0
      %s22 = sshll.u32 %s0, 4
      %s23 = int_to_ptr.hbm [resolvable:$true] %s22
      %25 = dma.hbm_to_smem %s23, 16, [#allocation3], [#allocation6]
    $region5: #{tpu_custom_call.1} parent=1 // pred_fallthru
      _
    // Predicated region
    $region6: #{tpu_custom_call.1} parent=1 // pred_check
      _
    $region7: #{tpu_custom_call.1} parent=1 // pred_check_branch
      %27 = sbr.rel (0) target = $region9
    $region8: #{tpu_custom_call.1} parent=1 // pred_region
      _
    $region9: #{tpu_custom_call.1} parent=1 // pred_fallthru
      _
    // Predicated region
    $region10: #{tpu_custom_call.1} parent=1 // pred_check
      _
    $region11: #{tpu_custom_call.1} parent=1 // pred_check_branch
      %29 = sbr.rel (0) target = $region13
    $region12: #{tpu_custom_call.1} parent=1 // pred_region
      _
    $region13: #{tpu_custom_call.1} parent=1 // pred_fallthru
      _
    // Predicated region
    $region14: #{tpu_custom_call.1} parent=1 // pred_check
      _
    $region15: #{tpu_custom_call.1} parent=1 // pred_check_branch
      %31 = sbr.rel (0) target = $region17
    $region16: #{tpu_custom_call.1} parent=1 // pred_region
      %33 = vsyncadd [#allocation4], 0
      %s34 = sshll.u32 %s3, 4
      %s35 = int_to_ptr.hbm [resolvable:$true] %s34
      %s36 = sshll.u32 [#allocation7], 4
      %s37 = int_to_ptr.vmem [resolvable:$true] %s36
      %42 = dma.hbm_to_vmem [thread:$0]  %s35, 512, %s37, [#allocation4], 128, 128, 8
    $region17: #{tpu_custom_call.1} parent=1 // pred_fallthru
      _
    // Predicated region
    $region18: #{tpu_custom_call.1} parent=1 // pred_check
      _
    $region19: #{tpu_custom_call.1} parent=1 // pred_check_branch
      %44 = sbr.rel (0) target = $region21
    $region20: #{tpu_custom_call.1} parent=1 // pred_region
      %46 = vsyncadd [#allocation9], 0
      %s47 = sshll.u32 %s4, 4
      %s48 = int_to_ptr.hbm [resolvable:$true] %s47
      %s49 = sshll.u32 [#allocation8], 4
      %s50 = int_to_ptr.vmem [resolvable:$true] %s49
      %55 = dma.hbm_to_vmem [thread:$0]  %s48, 4096, %s50, [#allocation9], 128, 128, 8
    $region21: #{tpu_custom_call.1} parent=1 // pred_fallthru
      _
    // Predicated region
    $region22: #{tpu_custom_call.1} parent=1 // pred_check
      _
    $region23: #{tpu_custom_call.1} parent=1 // pred_check_branch
      %57 = sbr.rel (0) target = $region25
    $region24: #{tpu_custom_call.1} parent=1 // pred_region
      _
    $region25: #{tpu_custom_call.1} parent=1 // pred_fallthru
      _
    // Predicated region
    $region26: #{tpu_custom_call.1} parent=1 // pred_check
      _
    $region27: #{tpu_custom_call.1} parent=1 // pred_check_branch
      %59 = sbr.rel (0) target = $region29
    $region28: #{tpu_custom_call.1} parent=1 // pred_region
      _
    $region29: #{tpu_custom_call.1} parent=1 // pred_fallthru
      _
    // Predicated region
    $region30: #{tpu_custom_call.1} parent=1 // pred_check
      _
    $region31: #{tpu_custom_call.1} parent=1 // pred_check_branch
      %61 = sbr.rel (0) target = $region33
    $region32: #{tpu_custom_call.1} parent=1 // pred_region
      %63 = dma.done [#allocation6], 16
    $region33: #{tpu_custom_call.1} parent=1 // pred_fallthru
      _
    // Predicated region
    $region34: #{tpu_custom_call.1} parent=1 // pred_check
      _
    $region35: #{tpu_custom_call.1} parent=1 // pred_check_branch
      %65 = sbr.rel (0) target = $region37
    $region36: #{tpu_custom_call.1} parent=1 // pred_region
      %67 = dma.done [#allocation4], 512
    $region37: #{tpu_custom_call.1} parent=1 // pred_fallthru
      _
    // Predicated region
    $region38: #{tpu_custom_call.1} parent=1 // pred_check
      _
    $region39: #{tpu_custom_call.1} parent=1 // pred_check_branch
      %69 = sbr.rel (0) target = $region41
    $region40: #{tpu_custom_call.1} parent=1 // pred_region
      %71 = dma.done [#allocation9], 4096
    $region41: #{tpu_custom_call.1} parent=1 // pred_fallthru
      _
    %72 = sfence
    %v73 = vld [vmem:[%s2] sm:$0x1]
    %v74 = vld [vmem:[%s2 + $0x1] sm:$0x1]
    %v75 = vld [vmem:[#allocation7] sm:$0xff]
    %v76 = vld [vmem:[#allocation7 + $0x8] sm:$0xff]
    %v77 = vld [vmem:[#allocation7 + $0x10] sm:$0xff]
    %v78 = vld [vmem:[#allocation7 + $0x18] sm:$0xff]
    %v81 = vperm.slane %v73, 0
    %v82 = vperm.slane %v74, 0
    %v85 = vld [vmem:[#allocation8] sm:$0xff]
    %v86 = vld [vmem:[#allocation8 + $0x8] sm:$0xff]
    %v87 = vld [vmem:[#allocation8 + $0x10] sm:$0xff]
    %v88 = vld [vmem:[#allocation8 + $0x18] sm:$0xff]
    %v89 = vld [vmem:[#allocation8 + $0x20] sm:$0xff]
    %v90 = vld [vmem:[#allocation8 + $0x28] sm:$0xff]
    %v91 = vld [vmem:[#allocation8 + $0x30] sm:$0xff]
    %v92 = vld [vmem:[#allocation8 + $0x38] sm:$0xff]
    %v93 = vld [vmem:[#allocation8 + $0x40] sm:$0xff]
    %v94 = vld [vmem:[#allocation8 + $0x48] sm:$0xff]
    %v95 = vld [vmem:[#allocation8 + $0x50] sm:$0xff]
    %v96 = vld [vmem:[#allocation8 + $0x58] sm:$0xff]
    %v97 = vld [vmem:[#allocation8 + $0x60] sm:$0xff]
    %v98 = vld [vmem:[#allocation8 + $0x68] sm:$0xff]
    %v99 = vld [vmem:[#allocation8 + $0x70] sm:$0xff]
    %v100 = vld [vmem:[#allocation8 + $0x78] sm:$0xff]
    %v101 = vld [vmem:[#allocation8 + $0x80] sm:$0xff]
    %v102 = vld [vmem:[#allocation8 + $0x88] sm:$0xff]
    %v103 = vld [vmem:[#allocation8 + $0x90] sm:$0xff]
    %v104 = vld [vmem:[#allocation8 + $0x98] sm:$0xff]
    %v105 = vld [vmem:[#allocation8 + $0xa0] sm:$0xff]
    %v106 = vld [vmem:[#allocation8 + $0xa8] sm:$0xff]
    %v107 = vld [vmem:[#allocation8 + $0xb0] sm:$0xff]
    %v108 = vld [vmem:[#allocation8 + $0xb8] sm:$0xff]
    %v109 = vld [vmem:[#allocation8 + $0xc0] sm:$0xff]
    %v110 = vld [vmem:[#allocation8 + $0xc8] sm:$0xff]
    %v111 = vld [vmem:[#allocation8 + $0xd0] sm:$0xff]
    %v112 = vld [vmem:[#allocation8 + $0xd8] sm:$0xff]
    %v113 = vld [vmem:[#allocation8 + $0xe0] sm:$0xff]
    %v114 = vld [vmem:[#allocation8 + $0xe8] sm:$0xff]
    %v115 = vld [vmem:[#allocation8 + $0xf0] sm:$0xff]
    %v116 = vld [vmem:[#allocation8 + $0xf8] sm:$0xff]
    %v117 = vld [vmem:[%s5] sm:$0x1]
    %v119 = vperm.slane %v117, 0
    %121 = vmatpush.msra.mxu0 %v100
    %122 = vmatpush.msra.mxu0 %v99
    %123 = vmatpush.msra.mxu0 %v98
    %124 = vmatpush.msra.mxu0 %v97
    %125 = vmatpush.msra.mxu0 %v96
    %126 = vmatpush.msra.mxu0 %v95
    %127 = vmatpush.msra.mxu0 %v94
    %128 = vmatpush.msra.mxu0 %v93
    %129 = vmatpush.msra.mxu0 %v92
    %130 = vmatpush.msra.mxu0 %v91
    %131 = vmatpush.msra.mxu0 %v90
    %132 = vmatpush.msra.mxu0 %v89
    %133 = vmatpush.msra.mxu0 %v88
    %134 = vmatpush.msra.mxu0 %v87
    %135 = vmatpush.msra.mxu0 %v86
    %136 = vmatpush.msra.mxu0 %v85
    %137 = vmatmul.f32.gmra.mxu0 %v81
    %v138 = vpop.f32.mrf.mxu0
    %v139 = vadd.f32 %v119, %v138
    %140 = vmatmul.f32.gmra.mxu0 %v81
    %v141 = vpop.f32.mrf.mxu0
    %v142 = vadd.f32 %v119, %v141
    %143 = vmatmul.f32.gmra.mxu0 %v82
    %v144 = vpop.f32.mrf.mxu0
    %v145 = vadd.f32 %v119, %v144
    %146 = vmatmul.f32.gmra.mxu0 %v82
    %v147 = vpop.f32.mrf.mxu0
    %v148 = vadd.f32 %v119, %v147
    %149 = vdwg.mxu0
    %150 = vmatpush.msra.mxu0 %v116
    %151 = vmatpush.msra.mxu0 %v115
    %152 = vmatpush.msra.mxu0 %v114
    %153 = vmatpush.msra.mxu0 %v113
    %154 = vmatpush.msra.mxu0 %v112
    %155 = vmatpush.msra.mxu0 %v111
    %156 = vmatpush.msra.mxu0 %v110
    %157 = vmatpush.msra.mxu0 %v109
    %158 = vmatpush.msra.mxu0 %v108
    %159 = vmatpush.msra.mxu0 %v107
    %160 = vmatpush.msra.mxu0 %v106
    %161 = vmatpush.msra.mxu0 %v105
    %162 = vmatpush.msra.mxu0 %v104
    %163 = vmatpush.msra.mxu0 %v103
    %164 = vmatpush.msra.mxu0 %v102
    %165 = vmatpush.msra.mxu0 %v101
    %166 = vmatmul.f32.gmra.mxu0 %v75
    %v167 = vpop.f32.mrf.mxu0
    %v168 = vadd.f32 %v139, %v167
    %169 = vmatmul.f32.gmra.mxu0 %v76
    %v170 = vpop.f32.mrf.mxu0
    %v171 = vadd.f32 %v142, %v170
    %172 = vmatmul.f32.gmra.mxu0 %v77
    %v173 = vpop.f32.mrf.mxu0
    %v174 = vadd.f32 %v145, %v173
    %175 = vmatmul.f32.gmra.mxu0 %v78
    %v176 = vpop.f32.mrf.mxu0
    %v177 = vadd.f32 %v148, %v176
    %178 = vdwg.mxu0
    %v179 = vtanh.pop %v168
    %v180 = vtanh.pop %v171
    %v181 = vtanh.pop %v174
    %v182 = vtanh.pop %v177
    %v183 = vld [vmem:[%s6] sm:$0x1]
    %v185 = vperm.slane %v183, 0
    %v187 = vmul.f32 %v179, %v185
    %v188 = vmul.f32 %v180, %v185
    %v189 = vmul.f32 %v181, %v185
    %v190 = vmul.f32 %v182, %v185
    %191 = vadd.xlane.f32.xlu0 %v187
    %v192 = vpop.xlane.xlu0 %191
    %193 = vadd.xlane.f32.xlu0 %v188
    %v194 = vpop.xlane.xlu0 %193
    %195 = vadd.xlane.f32.xlu0 %v189
    %v196 = vpop.xlane.xlu0 %195
    %197 = vadd.xlane.f32.xlu0 %v190
    %v198 = vpop.xlane.xlu0 %197
    %s199 = sld [smem:[#allocation2]]
    %v200 = vstv %s199
    %v201 = vadd.f32 %v192, %v200
    %v202 = vadd.f32 %v194, %v200
    %v203 = vadd.f32 %v196, %v200
    %v204 = vadd.f32 %v198, %v200
    %v205 = vlaneseq
    %v206 = vand.u32 %v205, 127
    %s207 = sld [smem:[#allocation3]]
    %v208 = vstv %s207
    %vm209 = vcmp.lt.s32.totalorder %v206, %v208
    %v210 = vsel %vm209, 1, 0
    %v211 = vcvt.s32.f32 %v210
    %s212 = sld [smem:[#allocation3 + $0x1]]
    %v213 = vstv %s212
    %vm214 = vcmp.lt.s32.totalorder %v206, %v213
    %v215 = vsel %vm214, 1, 0
    %v216 = vcvt.s32.f32 %v215
    %vm217 = vcmask 1040384
    %v218 = vsel %vm217, %v211, %v216
    %v220 = vperm.slane %v218, 0
    %v221 = vlaneseq
    %v222 = vshrl.u32 %v221, 7
    %224 = vset.pattern.permute.xlu0 %v222
    %225 = vperm.xlu0 %224, %v220
    %v226 = vpop.permute.xlu0 %225
    %v227 = vlaneseq
    %v228 = vshrl.u32 %v227, 7
    %v229 = vadd.s32 %v228, 8
    %230 = vset.pattern.permute.xlu0 %v229
    %231 = vperm.xlu0 %230, %v220
    %v232 = vpop.permute.xlu0 %231
    %v233 = vperm.slane %v218, 1
    %v234 = vlaneseq
    %v235 = vshrl.u32 %v234, 7
    %237 = vset.pattern.permute.xlu0 %v235
    %238 = vperm.xlu0 %237, %v233
    %v239 = vpop.permute.xlu0 %238
    %v240 = vlaneseq
    %v241 = vshrl.u32 %v240, 7
    %v242 = vadd.s32 %v241, 8
    %243 = vset.pattern.permute.xlu0 %v242
    %244 = vperm.xlu0 %243, %v233
    %v245 = vpop.permute.xlu0 %244
    %v250 = vmul.f32 %v201, %v226
    %v251 = vmul.f32 %v202, %v232
    %v252 = vmul.f32 %v203, %v239
    %v253 = vmul.f32 %v204, %v245
    %258 = vset.pattern.permute.xlu0 0
    %259 = vperm.xlu0 %258, %v250
    %v260 = vpop.permute.xlu0 %259
    %261 = vset.pattern.permute.xlu0 0
    %262 = vperm.xlu0 %261, %v251
    %v263 = vpop.permute.xlu0 %262
    %264 = vset.pattern.permute.xlu0 0
    %265 = vperm.xlu0 %264, %v252
    %v266 = vpop.permute.xlu0 %265
    %267 = vset.pattern.permute.xlu0 0
    %268 = vperm.xlu0 %267, %v253
    %v269 = vpop.permute.xlu0 %268
    %v270 = vperm.slane %v260, %v206
    %v271 = vadd.s32 %v206, 4294967288
    %v272 = vperm.slane %v263, %v271
    %vm273 = vcmask 130112
    %v274 = vsel %vm273, %v272, %v270
    %v275 = vperm.slane %v266, %v206
    %v276 = vperm.slane %v269, %v271
    %v277 = vsel %vm273, %v276, %v275
    %vm278 = vcmask 1041409
    %v279 = vsel %vm278, %v277, %v274
    %vm281 = vcmask 123904
    %v282 = vsel %vm281, %v279, -inf
    %283 = vmax.xlane.f32.xlu0 %v282
    %v284 = vpop.xlane.xlu0 %283
    %v286 = vperm.slane %v284, 0
    %v287 = vperm.slane %v284, 1
    %v290 = vsub.f32 %v250, %v286
    %v291 = vsub.f32 %v251, %v286
    %v292 = vsub.f32 %v252, %v287
    %v293 = vsub.f32 %v253, %v287
    %v294 = vmul.f32 %v290, 1.442695
    %v295 = vpow.pop %v294
    %v296 = vmul.f32 %v291, 1.442695
    %v297 = vpow.pop %v296
    %v298 = vmul.f32 %v292, 1.442695
    %v299 = vpow.pop %v298
    %v300 = vmul.f32 %v293, 1.442695
    %v301 = vpow.pop %v300
    %306 = vset.pattern.permute.xlu0 0
    %307 = vperm.xlu0 %306, %v295
    %v308 = vpop.permute.xlu0 %307
    %309 = vset.pattern.permute.xlu0 0
    %310 = vperm.xlu0 %309, %v297
    %v311 = vpop.permute.xlu0 %310
    %312 = vset.pattern.permute.xlu0 0
    %313 = vperm.xlu0 %312, %v299
    %v314 = vpop.permute.xlu0 %313
    %315 = vset.pattern.permute.xlu0 0
    %316 = vperm.xlu0 %315, %v301
    %v317 = vpop.permute.xlu0 %316
    %v318 = vperm.slane %v308, %v206
    %v319 = vperm.slane %v311, %v271
    %v320 = vsel %vm273, %v319, %v318
    %v321 = vperm.slane %v314, %v206
    %v322 = vperm.slane %v317, %v271
    %v323 = vsel %vm273, %v322, %v321
    %v324 = vsel %vm278, %v323, %v320
    %v326 = vsel %vm281, %v324, 0.0
    %327 = vadd.xlane.f32.xlu0 %v326
    %v328 = vpop.xlane.xlu0 %327
    %v329 = vrcp.pop %v328
    %v331 = vperm.slane %v329, 0
    %v332 = vperm.slane %v329, 1
    %v335 = vmul.f32 %v295, %v331
    %v336 = vmul.f32 %v297, %v331
    %v337 = vmul.f32 %v299, %v332
    %v338 = vmul.f32 %v301, %v332
    %341 = vset.pattern.permute.xlu0 0
    %342 = vperm.xlu0 %341, %v335
    %v343 = vpop.permute.xlu0 %342
    %344 = vset.pattern.permute.xlu0 0
    %345 = vperm.xlu0 %344, %v336
    %v346 = vpop.permute.xlu0 %345
    %v347 = vperm.slane %v343, %v206
    %v348 = vperm.slane %v346, %v271
    %v349 = vsel %vm273, %v348, %v347
    %vm350 = vcmask 130048
    %v351 = vsel %vm350, %v349, 0
    %353 = vmatpush.msra.mxu0 0.0
    %354 = vmatpush.msra.mxu0 0.0
    %355 = vmatpush.msra.mxu0 0.0
    %356 = vmatpush.msra.mxu0 0.0
    %357 = vmatpush.msra.mxu0 0.0
    %358 = vmatpush.msra.mxu0 0.0
    %359 = vmatpush.msra.mxu0 0.0
    %360 = vmatpush.msra.mxu0 0.0
    %361 = vmatpush.msra.mxu0 0.0
    %362 = vmatpush.msra.mxu0 0.0
    %363 = vmatpush.msra.mxu0 0.0
    %364 = vmatpush.msra.mxu0 0.0
    %365 = vmatpush.msra.mxu0 0.0
    %366 = vmatpush.msra.mxu0 0.0
    %367 = vmatpush.msra.mxu0 %v76
    %368 = vmatpush.msra.mxu0 %v75
    %369 = vmatmul.f32.gmra.mxu0 %v351
    %v370 = vpop.f32.mrf.mxu0
    %v371 = vadd.f32 0.0, %v370
    %372 = vdwg.mxu0
    %375 = vset.pattern.permute.xlu0 0
    %376 = vperm.xlu0 %375, %v337
    %v377 = vpop.permute.xlu0 %376
    %378 = vset.pattern.permute.xlu0 0
    %379 = vperm.xlu0 %378, %v338
    %v380 = vpop.permute.xlu0 %379
    %v381 = vperm.slane %v377, %v206
    %v382 = vperm.slane %v380, %v271
    %v383 = vsel %vm273, %v382, %v381
    %v384 = vsel %vm350, %v383, 0
    %386 = vmatpush.msra.mxu0 0.0
    %387 = vmatpush.msra.mxu0 0.0
    %388 = vmatpush.msra.mxu0 0.0
    %389 = vmatpush.msra.mxu0 0.0
    %390 = vmatpush.msra.mxu0 0.0
    %391 = vmatpush.msra.mxu0 0.0
    %392 = vmatpush.msra.mxu0 0.0
    %393 = vmatpush.msra.mxu0 0.0
    %394 = vmatpush.msra.mxu0 0.0
    %395 = vmatpush.msra.mxu0 0.0
    %396 = vmatpush.msra.mxu0 0.0
    %397 = vmatpush.msra.mxu0 0.0
    %398 = vmatpush.msra.mxu0 0.0
    %399 = vmatpush.msra.mxu0 0.0
    %400 = vmatpush.msra.mxu0 %v78
    %401 = vmatpush.msra.mxu0 %v77
    %402 = vmatmul.f32.gmra.mxu0 %v384
    %v403 = vpop.f32.mrf.mxu0
    %v404 = vadd.f32 0.0, %v403
    %405 = vdwg.mxu0
    %406 = vst [vmem:[#allocation10] sm:$0x1] %v371
    %407 = vst [vmem:[#allocation10 + $0x1] sm:$0x1] %v404
    // Predicated region
    $region42: #{tpu_custom_call.1} parent=1 // pred_check
      _
    $region43: #{tpu_custom_call.1} parent=1 // pred_check_branch
      %409 = sbr.rel (0) target = $region45
    $region44: #{tpu_custom_call.1} parent=1 // pred_region
      %411 = vsyncadd [#allocation5], 0
      %s412 = sshll.u32 [#allocation10], 4
      %s413 = int_to_ptr.vmem [resolvable:$true] %s412
      %s414 = sshll.u32 %s7, 4
      %s415 = int_to_ptr.hbm [resolvable:$true] %s414
      %420 = dma.vmem_to_hbm [thread:$0]  %s413, 32, %s415, [#allocation5], 16, 16, 1
    $region45: #{tpu_custom_call.1} parent=1 // pred_fallthru
      _
    // Predicated region
    $region46: #{tpu_custom_call.1} parent=1 // pred_check
      _
    $region47: #{tpu_custom_call.1} parent=1 // pred_check_branch
      %422 = sbr.rel (0) target = $region49
    $region48: #{tpu_custom_call.1} parent=1 // pred_region
      %424 = dma.done [#allocation5], 32
    $region49: #{tpu_custom_call.1} parent=1 // pred_fallthru
      _
    %425 = vsyncpa [#allocation4], 1
    %426 = vsyncpa [#allocation9], 1
    %427 = vsyncpa [#allocation5], 1
    %428 = vsyncpa [#allocation6], 1

</llo_original>
